<compile_context>
chip_gen: v7x
topology: tpu7x:2x2x1
jax: 0.10.0
libtpu: 0.0.40
codegen_flags: <defaults>
</compile_context>

<pallas_src>
import functools

import jax
import jax.numpy as jnp
from jax.experimental import pallas as pl
from jax.experimental.pallas import tpu as pltpu


def _round_up(x, m):
    return ((x + m - 1) // m) * m


def _softmax_exp_dtype():
    """bf16 exp on v6e/v7x (bf16 EUP), f32 on older chips."""
    try:
        kind = jax.devices()[0].device_kind.lower()
    except Exception:
        return jnp.float32
    if any(t in kind for t in ("v2", "v3", "v4", "v5")):
        return jnp.float32
    return jnp.bfloat16


# -----------------------------------------------------------------------------
# Tiled matmul kernel:  out = act(LN?(a) @ b + bias) + residual?
# -----------------------------------------------------------------------------
def _matmul_kernel(a_ref, b_ref, bias_ref, *rest, act, ln_dim, has_res):
    has_ln = ln_dim is not None
    pos = 0
    if has_ln:
        g_ref, be_ref = rest[0], rest[1]
        pos = 2
    if has_res:
        res_ref = rest[pos]
        pos += 1
    o_ref = rest[pos]
    acc_ref = rest[pos + 1]

    k = pl.program_id(2)

    @pl.when(k == 0)
    def _():
        acc_ref[...] = jnp.zeros_like(acc_ref)

    a = a_ref[...]
    if has_ln:
        # Fused LayerNorm prologue (requires the full K row in one tile).
        # E[x^2]-E[x]^2 formulation so zero-padded K columns don't bias stats.
        x = a.astype(jnp.float32)
        s1 = jnp.sum(x, axis=-1, keepdims=True)
        s2 = jnp.sum(x * x, axis=-1, keepdims=True)
        mu = s1 / ln_dim
        var = s2 / ln_dim - mu * mu
        x = (x - mu) * jax.lax.rsqrt(var + 1e-5)
        a = (x * g_ref[...] + be_ref[...]).astype(jnp.bfloat16)

    acc_ref[...] += jnp.dot(a, b_ref[...], preferred_element_type=jnp.float32)

    @pl.when(k == pl.num_programs(2) - 1)
    def _():
        r = acc_ref[...] + bias_ref[...]
        if act == "relu":
            r = jnp.maximum(r, 0.0)
        elif act == "gelu":
            r = jax.nn.gelu(r, approximate=False)
        if has_res:
            r = r + res_ref[...].astype(jnp.float32)
        o_ref[...] = r.astype(o_ref.dtype)


def pallas_matmul(a, b, bias=None, act=None, ln=None, residual=None,
                  out_dtype=jnp.bfloat16):
    """out = act(LN?(a) @ b + bias) + residual?.  a: (M,K), b: (K,N)."""
    M, K = a.shape
    K2, N = b.shape
    assert K == K2
    if bias is None:
        bias = jnp.zeros((N,), jnp.float32)

    tm = min(512, _round_up(M, 16))
    tn = min(1024, _round_up(N, 128))
    if ln is not None:
        tk = _round_up(K, 128)          # LN prologue needs the whole row
    else:
        tk = min(512, _round_up(K, 128))
    Mp, Np, Kp = _round_up(M, tm), _round_up(N, tn), _round_up(K, tk)

    a_p = jnp.pad(a.astype(jnp.bfloat16), ((0, Mp - M), (0, Kp - K)))
    b_p = jnp.pad(b.astype(jnp.bfloat16), ((0, Kp - K), (0, Np - N)))
    bias_p = jnp.pad(bias.astype(jnp.float32), (0, Np - N)).reshape(1, Np)

    in_specs = [
        pl.BlockSpec((tm, tk), lambda i, j, k: (i, k)),
        pl.BlockSpec((tk, tn), lambda i, j, k: (k, j)),
        pl.BlockSpec((1, tn), lambda i, j, k: (0, j)),
    ]
    inputs = [a_p, b_p, bias_p]
    if ln is not None:
        g, be = ln
        g_p = jnp.pad(g.astype(jnp.float32), (0, Kp - K)).reshape(1, Kp)
        be_p = jnp.pad(be.astype(jnp.float32), (0, Kp - K)).reshape(1, Kp)
        in_specs += [pl.BlockSpec((1, Kp), lambda i, j, k: (0, 0)),
                     pl.BlockSpec((1, Kp), lambda i, j, k: (0, 0))]
        inputs += [g_p, be_p]
    if residual is not None:
        res_p = jnp.pad(residual.astype(jnp.bfloat16),
                        ((0, Mp - M), (0, Np - N)))
        in_specs.append(pl.BlockSpec((tm, tn), lambda i, j, k: (i, j)))
        inputs.append(res_p)

    out = pl.pallas_call(
        functools.partial(_matmul_kernel, act=act,
                          ln_dim=(K if ln is not None else None),
                          has_res=residual is not None),
        out_shape=jax.ShapeDtypeStruct((Mp, Np), out_dtype),
        grid_spec=pltpu.PrefetchScalarGridSpec(
            num_scalar_prefetch=0,
            grid=(Mp // tm, Np // tn, Kp // tk),
            in_specs=in_specs,
            out_specs=pl.BlockSpec((tm, tn), lambda i, j, k: (i, j)),
            scratch_shapes=[pltpu.VMEM((tm, tn), jnp.float32)],
        ),
        compiler_params=pltpu.CompilerParams(
            dimension_semantics=("parallel", "parallel", "arbitrary"),
            vmem_limit_bytes=48 * 1024 * 1024),
    )(*inputs)
    return out[:M, :N]


# -----------------------------------------------------------------------------
# Implicit-GEMM 3x3 convolution (pad=1, stride=1, NHWC)
# -----------------------------------------------------------------------------
def _conv3x3_kernel(x_hbm, w_ref, bias_ref, o_ref, xbuf, sem,
                    *, tm, halo, taps, act):
    b = pl.program_id(0)
    i = pl.program_id(1)
    j = pl.program_id(2)
    ni = pl.num_programs(1)
    slab = tm + 2 * halo

    def slab_copy(ti, slot):
        start = pl.multiple_of(ti * tm, 8)
        return pltpu.make_async_copy(
            x_hbm.at[b, pl.ds(start, slab)], xbuf.at[slot], sem.at[slot])

    # One slab DMA per (batch, M-tile); double-buffered across the i axis so the
    # fetch of slab i+1 overlaps the 9 tap matmuls of slab i.
    @pl.when(j == 0)
    def _():
        @pl.when(i == 0)
        def _():
            slab_copy(0, 0).start()              # prime this batch's first slab
        slab_copy(i, i % 2).wait()

        @pl.when(i + 1 < ni)
        def _():
            slab_copy(i + 1, (i + 1) % 2).start()

    slot = i % 2
    acc = jnp.zeros(o_ref.shape, jnp.float32)
    for t, off in enumerate(taps):               # 9 static shifted matmuls
        acc = acc + jnp.dot(xbuf[slot, pl.ds(off, tm), :], w_ref[t],
                            preferred_element_type=jnp.float32)
    r = acc + bias_ref[...]
    if act == "relu":
        r = jnp.maximum(r, 0.0)
    o_ref[...] = r.astype(o_ref.dtype)


def conv3x3_nhwc(x_nhwc, w2d, bias, act=None, out_dtype=jnp.bfloat16):
    """3x3 conv via implicit GEMM. w2d: (9*Cin, Cout) in (ky, kx, cin) tap order."""
    B, H, W, Cin = x_nhwc.shape
    Cout = w2d.shape[1]
    w = w2d.astype(jnp.bfloat16).reshape(9, Cin, Cout)

    Ws = _round_up(W + 2, 8)        # padded row stride, sublane-aligned
    P = (H + 2) * Ws                # flattened padded-image positions
    halo = _round_up(Ws + 1, 8)     # sublane-aligned halo margin

    tm = min(512, _round_up(P, 8))
    Pp = _round_up(P, tm)
    tn = min(512, _round_up(Cout, 128))
    Np = _round_up(Cout, tn)
    ni = Pp // tm

    # Zero-pad spatially (1 row/col + stride padding), flatten, add halo rows.
    xp = jnp.pad(x_nhwc.astype(jnp.bfloat16),
                 ((0, 0), (1, 1), (1, Ws - W - 1), (0, 0)))
    xf = xp.reshape(B, P, Cin)
    xm = jnp.pad(xf, ((0, 0), (halo, (Pp - P) + halo), (0, 0)))

    w_p = jnp.pad(w, ((0, 0), (0, 0), (0, Np - Cout)))
    bias_p = jnp.pad(bias.astype(jnp.float32), (0, Np - Cout)).reshape(1, Np)

    # Tap t = ky*3+kx reads xbuf row  r + halo + (ky-1)*Ws + (kx-1).
    taps = tuple(halo + (ky - 1) * Ws + (kx - 1)
                 for ky in range(3) for kx in range(3))

    out = pl.pallas_call(
        functools.partial(_conv3x3_kernel, tm=tm, halo=halo, taps=taps, act=act),
        out_shape=jax.ShapeDtypeStruct((B * Pp, Np), out_dtype),
        grid_spec=pltpu.PrefetchScalarGridSpec(
            num_scalar_prefetch=0,
            grid=(B, ni, Np // tn),
            in_specs=[
                pl.BlockSpec(memory_space=pl.ANY),                      # x (HBM)
                pl.BlockSpec((9, Cin, tn), lambda b, i, j: (0, 0, j)),  # weights
                pl.BlockSpec((1, tn), lambda b, i, j: (0, j)),          # bias
            ],
            out_specs=pl.BlockSpec(
                (tm, tn), lambda b, i, j, _ni=ni: (b * _ni + i, j)),
            scratch_shapes=[
                pltpu.VMEM((2, tm + 2 * halo, Cin), jnp.bfloat16),
                pltpu.SemaphoreType.DMA((2,)),
            ],
        ),
        compiler_params=pltpu.CompilerParams(
            # i carries the double-buffer chain -> "arbitrary"; b stays parallel.
            dimension_semantics=("parallel", "arbitrary", "arbitrary"),
            vmem_limit_bytes=48 * 1024 * 1024),
    )(xm, w_p, bias_p)

    y = out.reshape(B, Pp, Np)[:, :P, :Cout]
    y = y.reshape(B, H + 2, Ws, Cout)[:, 1:H + 1, 1:W + 1, :]
    return y


# -----------------------------------------------------------------------------
# Attention kernel: consumes (B, Sp, 3*heads*dh), produces (B, Sp, heads*dh).
# -----------------------------------------------------------------------------
def _attn_kernel(qkv_ref, mask_ref, o_ref, *, heads, dh, scale, exp_dtype):
    inner = heads * dh
    mask = mask_ref[...]                                  # (1, Sp) additive
    outs = []
    for h in range(heads):                                # static head loop
        q = qkv_ref[0, :, h * dh:(h + 1) * dh] * scale    # scale q, not scores
        k = qkv_ref[0, :, inner + h * dh: inner + (h + 1) * dh]
        v = qkv_ref[0, :, 2 * inner + h * dh: 2 * inner + (h + 1) * dh]
        s = jax.lax.dot_general(q, k, (((1,), (1,)), ((), ())),
                                preferred_element_type=jnp.float32)
        s = s + mask                                      # mask padded keys
        m = jnp.max(s, axis=-1, keepdims=True)
        p = jnp.exp((s - m).astype(exp_dtype))
        l = jnp.sum(p.astype(jnp.float32), axis=-1, keepdims=True)
        o = jnp.dot(p.astype(jnp.bfloat16), v,
                    preferred_element_type=jnp.float32)
        o = o * pl.reciprocal(l, approx=True)
        outs.append(o.astype(o_ref.dtype))
    o_ref[0] = jnp.concatenate(outs, axis=-1)             # lane-dense store


def pallas_attention(qkv, heads, dh):
    """qkv: (B, S, 3*heads*dh) bf16 -> (B, S, heads*dh)."""
    B, S, ti = qkv.shape
    inner = heads * dh
    assert ti == 3 * inner
    Sp = _round_up(S, 128)

    qkv_p = jnp.pad(qkv.astype(jnp.bfloat16), ((0, 0), (0, Sp - S), (0, 0)))
    mask = jnp.where(jnp.arange(Sp) < S, 0.0, -1e30)
    mask = mask.astype(jnp.float32).reshape(1, Sp)

    out = pl.pallas_call(
        functools.partial(_attn_kernel, heads=heads, dh=dh,
                          scale=dh ** -0.5, exp_dtype=_softmax_exp_dtype()),
        out_shape=jax.ShapeDtypeStruct((B, Sp, inner), jnp.bfloat16),
        grid_spec=pltpu.PrefetchScalarGridSpec(
            num_scalar_prefetch=0,
            grid=(B,),
            in_specs=[pl.BlockSpec((1, Sp, 3 * inner), lambda b: (b, 0, 0)),
                      pl.BlockSpec((1, Sp), lambda b: (0, 0))],
            out_specs=pl.BlockSpec((1, Sp, inner), lambda b: (b, 0, 0)),
        ),
        compiler_params=pltpu.CompilerParams(
            dimension_semantics=("parallel",),
            vmem_limit_bytes=48 * 1024 * 1024),
    )(qkv_p, mask)
    return out[:, :S, :]


# -----------------------------------------------------------------------------
# Row-tiled LayerNorm (only used for the final post-transformer LN)
# -----------------------------------------------------------------------------
def _ln_kernel(x_ref, g_ref, b_ref, o_ref):
    x = x_ref[...].astype(jnp.float32)
    mu = jnp.mean(x, axis=-1, keepdims=True)
    var = jnp.mean((x - mu) ** 2, axis=-1, keepdims=True)
    y = (x - mu) * jax.lax.rsqrt(var + 1e-5)
    o_ref[...] = (y * g_ref[...] + b_ref[...]).astype(o_ref.dtype)


def pallas_layernorm(x2d, gamma, beta, out_dtype=jnp.bfloat16):
    M, D = x2d.shape
    tm = min(512, _round_up(M, 8))
    Mp = _round_up(M, tm)
    x_p = jnp.pad(x2d.astype(jnp.bfloat16), ((0, Mp - M), (0, 0)))
    out = pl.pallas_call(
        _ln_kernel,
        out_shape=jax.ShapeDtypeStruct((Mp, D), out_dtype),
        grid_spec=pltpu.PrefetchScalarGridSpec(
            num_scalar_prefetch=0,
            grid=(Mp // tm,),
            in_specs=[
                pl.BlockSpec((tm, D), lambda i: (i, 0)),
                pl.BlockSpec((1, D), lambda i: (0, 0)),
                pl.BlockSpec((1, D), lambda i: (0, 0)),
            ],
            out_specs=pl.BlockSpec((tm, D), lambda i: (i, 0)),
        ),
        compiler_params=pltpu.CompilerParams(
            dimension_semantics=("parallel",)),
    )(x_p, gamma.reshape(1, D).astype(jnp.float32),
      beta.reshape(1, D).astype(jnp.float32))
    return out[:M]


# -----------------------------------------------------------------------------
# Glue ops (plain JAX, no heavy compute)
# -----------------------------------------------------------------------------
def patchify(cube_nchw, p):
    """'b c (h p1) (w p2) -> b (h w) (c p1 p2)'."""
    B, C, H, W = cube_nchw.shape
    hp, wp = H // p, W // p
    x = cube_nchw.reshape(B, C, hp, p, wp, p)
    x = x.transpose(0, 2, 4, 1, 3, 5)  # B, hp, wp, C, p, p
    return x.reshape(B, hp * wp, C * p * p)


def pixel_shuffle_nhwc(x, r):
    """NHWC pixel shuffle matching torch.nn.PixelShuffle on NCHW data."""
    B, H, W, CR = x.shape
    C = CR // (r * r)
    x = x.reshape(B, H, W, C, r, r)
    x = x.transpose(0, 1, 4, 2, 5, 3)  # B, H, r, W, r, C
    return x.reshape(B, H * r, W * r, C)


def fold_bn(w, b, gamma, beta, mean, var, eps=1e-5):
    """Fold eval-mode BatchNorm into conv weight/bias (w: (K, Cout))."""
    scale = gamma * jax.lax.rsqrt(var + eps)
    return w * scale[None, :], (b - mean) * scale + beta


def posemb_sincos_2d(h, w, dim, temperature=10000.0):
    y, x = jnp.meshgrid(jnp.arange(h), jnp.arange(w), indexing="ij")
    omega = jnp.arange(dim // 4) / (dim // 4 - 1)
    omega = 1.0 / (temperature ** omega)
    y = y.flatten()[:, None] * omega[None, :]
    x = x.flatten()[:, None] * omega[None, :]
    return jnp.concatenate(
        [jnp.sin(x), jnp.cos(x), jnp.sin(y), jnp.cos(y)], axis=1
    ).astype(jnp.float32)


# -----------------------------------------------------------------------------
# Parameter initialization (deterministic, synthetic)
# -----------------------------------------------------------------------------
def init_params(key, cfg, in_chans):
    keys = iter(jax.random.split(key, 256))

    def nrm(shape, std=0.02):
        return jax.random.normal(next(keys), shape, dtype=jnp.float32) * std

    p = cfg["patch_size"]
    D = cfg["dim"]
    inner = cfg["heads"] * cfg["dim_head"]
    mlp = int(D * cfg["mlp_ratio"])
    hid = cfg["fcn_hidden"]
    cout = cfg["channel_out"]
    nc = cfg["num_classes"]

    params = {
        "patch_embed_w": nrm((in_chans * p * p, D)),
        "patch_embed_b": jnp.zeros((D,), jnp.float32),
        "meta_w": nrm((9, D)),
        "meta_b": jnp.zeros((D,), jnp.float32),
        "cls_token": nrm((1, 1, D)),
        "ln_f_g": jnp.ones((D,), jnp.float32),
        "ln_f_b": jnp.zeros((D,), jnp.float32),
    }
    layers = []
    for _ in range(cfg["depth"]):
        layers.append({
            "ln1_g": jnp.ones((D,), jnp.float32), "ln1_b": jnp.zeros((D,), jnp.float32),
            "wqkv": nrm((D, 3 * inner)), "bqkv": jnp.zeros((3 * inner,), jnp.float32),
            "wo": nrm((inner, D)), "bo": jnp.zeros((D,), jnp.float32),
            "ln2_g": jnp.ones((D,), jnp.float32), "ln2_b": jnp.zeros((D,), jnp.float32),
            "w1": nrm((D, mlp)), "b1": jnp.zeros((mlp,), jnp.float32),
            "w2": nrm((mlp, D)), "b2": jnp.zeros((D,), jnp.float32),
        })
    params["layers"] = layers

    # FCNHead weights stored in (9*Cin, Cout) layout, tap order (ky, kx, cin)
    params.update({
        "c1_w": nrm((9 * D, hid)), "c1_b": nrm((hid,), 0.01),
        "bn1_g": jnp.abs(nrm((hid,), 0.1)) + 0.5, "bn1_b": nrm((hid,), 0.01),
        "bn1_m": nrm((hid,), 0.01), "bn1_v": jnp.abs(nrm((hid,), 0.1)) + 0.9,
        "c2_w": nrm((9 * hid, hid)), "c2_b": nrm((hid,), 0.01),
        "bn2_g": jnp.abs(nrm((hid,), 0.1)) + 0.5, "bn2_b": nrm((hid,), 0.01),
        "bn2_m": nrm((hid,), 0.01), "bn2_v": jnp.abs(nrm((hid,), 0.1)) + 0.9,
        "cps_w": nrm((9 * hid, cout * p * p)),
        "cps_b": jnp.zeros((cout * p * p,), jnp.float32),
        "cout_w": nrm((9 * cout, nc)),
        "cout_b": jnp.zeros((nc,), jnp.float32),
    })
    return params


# -----------------------------------------------------------------------------
# Forward pass (ClaySegmentor.forward)
# -----------------------------------------------------------------------------
def clay_segmentor_forward(params, datacube, cfg):
    cube = datacube["pixels"]  # NCHW, as in PyTorch
    B, C, H, W = cube.shape
    p = cfg["patch_size"]
    hp, wp = H // p, W // p
    D = cfg["dim"]
    heads, dh = cfg["heads"], cfg["dim_head"]
    inner = heads * dh

    # ----- SegmentEncoder -----
    # TODO(synk): Clay's wavelength-conditioned dynamic patch embedding
    # (WavesTransformer generating per-band weights) has no clean standalone
    # equivalent without the ClayEncoder source; a fixed linear patch embed is
    # used and `waves` is not consumed.
    x = patchify(cube, p)  # (B, L, C*p*p)
    L = hp * wp
    patches = pallas_matmul(
        x.reshape(B * L, -1), params["patch_embed_w"], params["patch_embed_b"]
    ).reshape(B, L, D)

    # add_encodings: 2D sincos positional embedding + metadata (time/latlon/gsd)
    pos = posemb_sincos_2d(hp, wp, D)
    meta = jnp.concatenate(
        [datacube["time"], datacube["latlon"], datacube["gsd"].reshape(B, 1)],
        axis=-1)  # (B, 9)
    meta_emb = pallas_matmul(meta, params["meta_w"], params["meta_b"])  # (B, D)
    patches = (patches.astype(jnp.float32) + pos[None, :, :]
               + meta_emb.astype(jnp.float32)[:, None, :]).astype(jnp.bfloat16)

    # prepend cls token
    cls = jnp.broadcast_to(params["cls_token"].astype(jnp.bfloat16), (B, 1, D))
    tok = jnp.concatenate([cls, patches], axis=1)  # (B, S, D) bf16
    S = L + 1
    tok2d = tok.reshape(B * S, D)

    # Transformer: pre-norm attention + GELU MLP.  LN prologues and residual
    # adds are fused into the matmul kernels; attention consumes/produces the
    # (B*S, heads*dh) layout directly (no head-split transposes).
    for lyr in params["layers"]:
        qkv = pallas_matmul(tok2d, lyr["wqkv"], lyr["bqkv"],
                            ln=(lyr["ln1_g"], lyr["ln1_b"]))      # (B*S, 3*inner)
        attn = pallas_attention(qkv.reshape(B, S, 3 * inner), heads, dh)
        tok2d = pallas_matmul(attn.reshape(B * S, inner), lyr["wo"], lyr["bo"],
                              residual=tok2d)                      # attn + x

        mid = pallas_matmul(tok2d, lyr["w1"], lyr["b1"],
                            ln=(lyr["ln2_g"], lyr["ln2_b"]), act="gelu")
        tok2d = pallas_matmul(mid, lyr["w2"], lyr["b2"], residual=tok2d)

    tok2d = pallas_layernorm(tok2d, params["ln_f_g"], params["ln_f_b"])

    feat = tok2d.reshape(B, S, D)[:, 1:, :]    # drop cls token: (B, L, D)
    fmap = feat.reshape(B, hp, wp, D)          # NHWC feature map

    # ----- FCNHead -----
    # BatchNorm applied in eval mode (running stats), folded into the conv.
    w1, b1 = fold_bn(params["c1_w"], params["c1_b"], params["bn1_g"],
                     params["bn1_b"], params["bn1_m"], params["bn1_v"])
    y = conv3x3_nhwc(fmap, w1, b1, act="relu")
    w2, b2 = fold_bn(params["c2_w"], params["c2_b"], params["bn2_g"],
                     params["bn2_b"], params["bn2_m"], params["bn2_v"])
    y = conv3x3_nhwc(y, w2, b2, act="relu")
    y = conv3x3_nhwc(y, params["cps_w"], params["cps_b"])
    y = pixel_shuffle_nhwc(y, p)                               # (B, H, W, c_out)
    # Final classifier conv writes bf16 (Cout padded 3->128); slice then cast.
    y = conv3x3_nhwc(y, params["cout_w"], params["cout_b"],
                     out_dtype=jnp.bfloat16)                   # (B, H, W, n_cls)

    return y.transpose(0, 3, 1, 2).astype(jnp.float32)  # NCHW, f32 logits


# -----------------------------------------------------------------------------
# Demo
# -----------------------------------------------------------------------------
if __name__ == "__main__":
    # Small configuration consistent with the module structure
    # (real Clay: patch=8, dim=1024, depth=24, heads=16, dim_head=64; shrunk
    #  for the demo so heads*dim_head stays lane-dense (=128); FCNHead
    #  hidden_dim=512 / channel_out=64 kept as in the module).
    CFG = dict(
        patch_size=4, dim=128, depth=2, heads=4, dim_head=32, mlp_ratio=4.0,
        fcn_hidden=512, channel_out=64, num_classes=3,
    )
    B, C, H, W = 2, 3, 16, 16

    key = jax.random.PRNGKey(0)
    kp, kd = jax.random.split(key)
    params = init_params(kp, CFG, in_chans=C)

    k1, k2, k3 = jax.random.split(kd, 3)
    datacube = {
        "pixels": jax.random.normal(k1, (B, C, H, W), jnp.float32),
        "time": jax.random.normal(k2, (B, 4), jnp.float32),
        "latlon": jax.random.normal(k3, (B, 4), jnp.float32),
        "gsd": jnp.full((B, 1), 10.0, jnp.float32),
        "waves": jnp.array([0.665, 0.56, 0.49], jnp.float32),
    }

    logits = clay_segmentor_forward(params, datacube, CFG)
    jax.block_until_ready(logits)
    assert logits.shape == (B, CFG["num_classes"], H, W), logits.shape
    assert bool(jnp.all(jnp.isfinite(logits)))
    print("KERNEL_OK")
</pallas_src>

<mosaic_0001>
module attributes {stable_mosaic.version = 11 : i64} {
  func.func @_matmul_kernel(%arg0: i32, %arg1: i32, %arg2: i32, %arg3: memref<32x128xbf16, #tpu.memory_space<vmem>>, %arg4: memref<128x128xbf16, #tpu.memory_space<vmem>>, %arg5: memref<1x128xf32, #tpu.memory_space<vmem>>, %arg6: memref<32x128xbf16, #tpu.memory_space<vmem>>, %arg7: memref<32x128xf32, #tpu.memory_space<vmem>>) attributes {dimension_semantics = [#tpu.dimension_semantics<parallel>, #tpu.dimension_semantics<parallel>, #tpu.dimension_semantics<arbitrary>], iteration_bounds = array<i64: 1, 1, 1>, scalar_prefetch = 0 : i64, scratch_operands = 1 : i64, tpu.core_type = #tpu.core_type<tc>, window_params = [{transform_indices = @transform_0, window_bounds = array<i64: 32, 128>}, {transform_indices = @transform_1, window_bounds = array<i64: 128, 128>}, {transform_indices = @transform_2, window_bounds = array<i64: 1, 128>}, {transform_indices = @transform_3, window_bounds = array<i64: 32, 128>}]} {
    %c0_i32 = arith.constant 0 : i32
    %0 = arith.cmpi eq, %arg2, %c0_i32 : i32
    %1 = arith.extui %0 : i1 to i32
    %c0_i32_0 = arith.constant 0 : i32
    %2 = arith.cmpi ne, %1, %c0_i32_0 : i32
    scf.if %2 {
      %cst_10 = arith.constant 0.000000e+00 : f32
      %12 = vector.broadcast %cst_10 : f32 to vector<32x128xf32>
      %c0_11 = arith.constant 0 : index
      %c0_12 = arith.constant 0 : index
      %13 = vector.load %arg7[%c0_11, %c0_12] : memref<32x128xf32, #tpu.memory_space<vmem>>, vector<32x128xf32>
      tpu.vector_store %arg7[%c0_11, %c0_12], %12 {strides = array<i32>} : memref<32x128xf32, #tpu.memory_space<vmem>>, vector<32x128xf32>,
    } else {
    }
    %c0 = arith.constant 0 : index
    %c0_1 = arith.constant 0 : index
    %3 = vector.load %arg3[%c0, %c0_1] : memref<32x128xbf16, #tpu.memory_space<vmem>>, vector<32x128xbf16>
    %c0_2 = arith.constant 0 : index
    %c0_3 = arith.constant 0 : index
    %4 = vector.load %arg7[%c0_2, %c0_3] : memref<32x128xf32, #tpu.memory_space<vmem>>, vector<32x128xf32>
    %c0_4 = arith.constant 0 : index
    %c0_5 = arith.constant 0 : index
    %5 = vector.load %arg4[%c0_4, %c0_5] : memref<128x128xbf16, #tpu.memory_space<vmem>>, vector<128x128xbf16>
    %cst = arith.constant dense<0.000000e+00> : vector<32x128xf32>
    %6 = tpu.matmul %3, %5, %cst {dimension_numbers = #tpu.dot_dimension_numbers<[1], [0], [0], [1], [0, 0, 1, 1], [], []>} : vector<32x128xbf16>, vector<128x128xbf16>, vector<32x128xf32> -> vector<32x128xf32>
    %7 = arith.addf %4, %6 : vector<32x128xf32>
    %c0_6 = arith.constant 0 : index
    %c0_7 = arith.constant 0 : index
    %8 = vector.load %arg7[%c0_6, %c0_7] : memref<32x128xf32, #tpu.memory_space<vmem>>, vector<32x128xf32>
    tpu.vector_store %arg7[%c0_6, %c0_7], %7 {strides = array<i32>} : memref<32x128xf32, #tpu.memory_space<vmem>>, vector<32x128xf32>,
    %c0_i32_8 = arith.constant 0 : i32
    %9 = arith.cmpi eq, %arg2, %c0_i32_8 : i32
    %10 = arith.extui %9 : i1 to i32
    %c0_i32_9 = arith.constant 0 : i32
    %11 = arith.cmpi ne, %10, %c0_i32_9 : i32
    scf.if %11 {
      %c0_10 = arith.constant 0 : index
      %c0_11 = arith.constant 0 : index
      %12 = vector.load %arg7[%c0_10, %c0_11] : memref<32x128xf32, #tpu.memory_space<vmem>>, vector<32x128xf32>
      %c0_12 = arith.constant 0 : index
      %c0_13 = arith.constant 0 : index
      %13 = vector.load %arg5[%c0_12, %c0_13] : memref<1x128xf32, #tpu.memory_space<vmem>>, vector<1x128xf32>
      %14 = vector.broadcast %13 : vector<1x128xf32> to vector<32x128xf32>
      %15 = arith.addf %12, %14 : vector<32x128xf32>
      %16 = arith.truncf %15 : vector<32x128xf32> to vector<32x128xbf16>
      %c0_14 = arith.constant 0 : index
      %c0_15 = arith.constant 0 : index
      %17 = vector.load %arg6[%c0_14, %c0_15] : memref<32x128xbf16, #tpu.memory_space<vmem>>, vector<32x128xbf16>
      tpu.vector_store %arg6[%c0_14, %c0_15], %16 {strides = array<i32>} : memref<32x128xbf16, #tpu.memory_space<vmem>>, vector<32x128xbf16>,
    } else {
    }
    return
  }
  func.func @transform_0(%arg0: i32, %arg1: i32, %arg2: i32) -> (i32, i32) {
    %c0_i32 = arith.constant 0 : i32
    return %arg0, %arg2 : i32, i32
  }
  func.func @transform_1(%arg0: i32, %arg1: i32, %arg2: i32) -> (i32, i32) {
    %c0_i32 = arith.constant 0 : i32
    return %arg2, %arg1 : i32, i32
  }
  func.func @transform_2(%arg0: i32, %arg1: i32, %arg2: i32) -> (i32, i32) {
    %c0_i32 = arith.constant 0 : i32
    %c0_i32_0 = arith.constant 0 : i32
    return %c0_i32, %arg1 : i32, i32
  }
  func.func @transform_3(%arg0: i32, %arg1: i32, %arg2: i32) -> (i32, i32) {
    %c0_i32 = arith.constant 0 : i32
    return %arg0, %arg1 : i32, i32
  }
}

</mosaic_0001>

<llo_original>
// kernel: tpu_custom_call.1
$region0: #{tpu_custom_call.1}
  #allocation0 [shape = 'u32[]', space=smem, size = 0x4, offset = 0x4, fixed_abs, tag = 'smem constant byte address 0x4 - core index']
  #allocation1 [shape = 'u32[144,128]{1,0:T(1,128)}', space=vmem, size = 0x12000, scoped, tag = 'internal scratch']
  #allocation2 [shape = 'f32[32,128]{1,0:T(8,128)}', space=vmem, size = 0x4000, scoped, tag = 'scratch operand']
  %s0 = inlined_call_operand.hbm [shape: bf16[32,128], index: 0, kind: input, shape index: {}]
  %s1 = inlined_call_operand.hbm [shape: bf16[128,128], index: 1, kind: input, shape index: {}]
  %s2 = inlined_call_operand.vmem [shape: f32[1,128], index: 2, kind: input, shape index: {}]
  %s3 = inlined_call_operand.hbm [shape: bf16[32,128], index: 3, kind: output, shape index: {}]
  %s4 = sld [smem:[#allocation0]]
  $region38: #{tpu_custom_call.1} parent=0
    _
  %s6 = ssub.s32 1, %s4
  %s7 = scalar_select 0, %s6, %s4
  $region1: #{tpu_custom_call.1} parent=0
    #allocation3 [shape = 'u8[8192]{0}', space=vmem, size = 0x2000, scoped, tag = 'input window, operand 0, single buffered']
    #allocation4 [shape = 's32[1]{0}', space=sflag, size = 0x4, scoped, tag = 'scoped memory for tpu_custom_call.1']
    #allocation5 [shape = 's32[1]{0}', space=sflag, size = 0x4, scoped, tag = 'scoped memory for tpu_custom_call.1']
    #allocation6 [shape = 'u8[32768]{0}', space=vmem, size = 0x8000, scoped, tag = 'input window, operand 1, single buffered']
    #allocation7 [shape = 's32[1]{0}', space=sflag, size = 0x4, scoped, tag = 'scoped memory for tpu_custom_call.1']
    #allocation8 [shape = 'u8[8192]{0}', space=vmem, size = 0x2000, scoped, tag = 'output window, operand 0, single buffered']
    %8 = vsyncpa [#allocation4], 0
    %9 = vsyncpa [#allocation7], 0
    %10 = vsyncpa [#allocation5], 0
    // Predicated region
    $region2: #{tpu_custom_call.1} parent=1 // pred_check
      _
    $region3: #{tpu_custom_call.1} parent=1 // pred_check_branch
      %12 = sbr.rel (0) target = $region5
    $region4: #{tpu_custom_call.1} parent=1 // pred_region
      %s14 = ssub.s32 256, 256
      %15 = vsyncadd [#allocation4], %s14
      %s16 = sshll.u32 [#allocation3], 4
      %s17 = int_to_ptr.vmem [resolvable:$true] %s16
      %22 = dma.hbm_to_vmem [thread:$0]  %s0, 256, %s17, [#allocation4], 64, 64, 4
    $region5: #{tpu_custom_call.1} parent=1 // pred_fallthru
      _
    // Predicated region
    $region6: #{tpu_custom_call.1} parent=1 // pred_check
      _
    $region7: #{tpu_custom_call.1} parent=1 // pred_check_branch
      %24 = sbr.rel (0) target = $region9
    $region8: #{tpu_custom_call.1} parent=1 // pred_region
      %s26 = ssub.s32 1024, 1024
      %27 = vsyncadd [#allocation7], %s26
      %s28 = sshll.u32 [#allocation6], 4
      %s29 = int_to_ptr.vmem [resolvable:$true] %s28
      %34 = dma.hbm_to_vmem [thread:$0]  %s1, 1024, %s29, [#allocation7], 64, 64, 4
    $region9: #{tpu_custom_call.1} parent=1 // pred_fallthru
      _
    // Predicated region
    $region10: #{tpu_custom_call.1} parent=1 // pred_check
      _
    $region11: #{tpu_custom_call.1} parent=1 // pred_check_branch
      %36 = sbr.rel (0) target = $region13
    $region12: #{tpu_custom_call.1} parent=1 // pred_region
      _
    $region13: #{tpu_custom_call.1} parent=1 // pred_fallthru
      _
    // Predicated region
    $region14: #{tpu_custom_call.1} parent=1 // pred_check
      _
    $region15: #{tpu_custom_call.1} parent=1 // pred_check_branch
      %38 = sbr.rel (0) target = $region17
    $region16: #{tpu_custom_call.1} parent=1 // pred_region
      %39 = dma.done [#allocation4], 256
    $region17: #{tpu_custom_call.1} parent=1 // pred_fallthru
      _
    // Predicated region
    $region18: #{tpu_custom_call.1} parent=1 // pred_check
      _
    $region19: #{tpu_custom_call.1} parent=1 // pred_check_branch
      %41 = sbr.rel (0) target = $region21
    $region20: #{tpu_custom_call.1} parent=1 // pred_region
      %42 = dma.done [#allocation7], 1024
    $region21: #{tpu_custom_call.1} parent=1 // pred_fallthru
      _
    %p44 = scmp.eq.s32.totalorder 0, 0
    // Predicated region
    $region22: #{tpu_custom_call.1} parent=1 // pred_check
      %p45 = pneg %p44
    $region23: #{tpu_custom_call.1} parent=1 // pred_check_branch
      %47 = sbr.rel (%p45) target = $region25
    $region24: #{tpu_custom_call.1} parent=1 // pred_region
      %48 = vst [vmem:[#allocation2] sm:$0xff] 0.0
      %49 = vst [vmem:[#allocation2 + $0x8] sm:$0xff] 0.0
      %50 = vst [vmem:[#allocation2 + $0x10] sm:$0xff] 0.0
      %51 = vst [vmem:[#allocation2 + $0x18] sm:$0xff] 0.0
    $region25: #{tpu_custom_call.1} parent=1 // pred_fallthru
      _
    %v52 = vld [vmem:[#allocation3] sm:$0xf]
    %v53 = vld [vmem:[#allocation3 + $0x4] sm:$0xf]
    %v54 = vld [vmem:[#allocation3 + $0x8] sm:$0xf]
    %v55 = vld [vmem:[#allocation3 + $0xc] sm:$0xf]
    %v56 = vld [vmem:[#allocation2] sm:$0xff]
    %v57 = vld [vmem:[#allocation2 + $0x8] sm:$0xff]
    %v58 = vld [vmem:[#allocation2 + $0x10] sm:$0xff]
    %v59 = vld [vmem:[#allocation2 + $0x18] sm:$0xff]
    %v60 = vld [vmem:[#allocation6] sm:$0xf]
    %v61 = vld [vmem:[#allocation6 + $0x4] sm:$0xf]
    %v62 = vld [vmem:[#allocation6 + $0x8] sm:$0xf]
    %v63 = vld [vmem:[#allocation6 + $0xc] sm:$0xf]
    %v64 = vld [vmem:[#allocation6 + $0x10] sm:$0xf]
    %v65 = vld [vmem:[#allocation6 + $0x14] sm:$0xf]
    %v66 = vld [vmem:[#allocation6 + $0x18] sm:$0xf]
    %v67 = vld [vmem:[#allocation6 + $0x1c] sm:$0xf]
    %v68 = vld [vmem:[#allocation6 + $0x20] sm:$0xf]
    %v69 = vld [vmem:[#allocation6 + $0x24] sm:$0xf]
    %v70 = vld [vmem:[#allocation6 + $0x28] sm:$0xf]
    %v71 = vld [vmem:[#allocation6 + $0x2c] sm:$0xf]
    %v72 = vld [vmem:[#allocation6 + $0x30] sm:$0xf]
    %v73 = vld [vmem:[#allocation6 + $0x34] sm:$0xf]
    %v74 = vld [vmem:[#allocation6 + $0x38] sm:$0xf]
    %v75 = vld [vmem:[#allocation6 + $0x3c] sm:$0xf]
    %v80 = vunpack.c.l.b16 %v52
    %v81 = vunpack.c.l.b16 %v53
    %v82 = vunpack.c.l.b16 %v54
    %v83 = vunpack.c.l.b16 %v55
    %v84 = vpack.c.b16 %v81, %v80
    %v85 = vpack.c.b16 %v83, %v82
    %v104 = vunpack.c.l.b16 %v60
    %v105 = vunpack.c.l.b16 %v61
    %v106 = vunpack.c.l.b16 %v62
    %v107 = vunpack.c.l.b16 %v63
    %v108 = vunpack.c.l.b16 %v64
    %v109 = vunpack.c.l.b16 %v65
    %v110 = vunpack.c.l.b16 %v66
    %v111 = vunpack.c.l.b16 %v67
    %v112 = vunpack.c.l.b16 %v68
    %v113 = vunpack.c.l.b16 %v69
    %v114 = vunpack.c.l.b16 %v70
    %v115 = vunpack.c.l.b16 %v71
    %v116 = vunpack.c.l.b16 %v72
    %v117 = vunpack.c.l.b16 %v73
    %v118 = vunpack.c.l.b16 %v74
    %v119 = vunpack.c.l.b16 %v75
    %v120 = vpack.c.b16 %v105, %v104
    %v121 = vpack.c.b16 %v107, %v106
    %v122 = vpack.c.b16 %v109, %v108
    %v123 = vpack.c.b16 %v111, %v110
    %v124 = vpack.c.b16 %v113, %v112
    %v125 = vpack.c.b16 %v115, %v114
    %v126 = vpack.c.b16 %v117, %v116
    %v127 = vpack.c.b16 %v119, %v118
    %136 = vmatprep.subr.bf16.mxu0 0
    %137 = vmatpush1.bf16.msra.mxu0 %v120
    %138 = vmatprep.subr.bf16.mxu0 0
    %139 = vmatpush1.bf16.msra.mxu0 %v121
    %140 = vmatprep.subr.bf16.mxu0 0
    %141 = vmatpush1.bf16.msra.mxu0 %v122
    %142 = vmatprep.subr.bf16.mxu0 0
    %143 = vmatpush1.bf16.msra.mxu0 %v123
    %144 = vmatprep.subr.bf16.mxu0 0
    %145 = vmatpush1.bf16.msra.mxu0 %v124
    %146 = vmatprep.subr.bf16.mxu0 0
    %147 = vmatpush1.bf16.msra.mxu0 %v125
    %148 = vmatprep.subr.bf16.mxu0 0
    %149 = vmatpush1.bf16.msra.mxu0 %v126
    %150 = vmatprep.subr.bf16.mxu0 0
    %151 = vmatpush1.bf16.msra.mxu0 %v127
    %152 = vmatprep.subr.bf16.mxu0 0
    %153 = vmatpush1.bf16.msra.mxu0 0
    %154 = vmatprep.subr.bf16.mxu0 0
    %155 = vmatpush1.bf16.msra.mxu0 0
    %156 = vmatprep.subr.bf16.mxu0 0
    %157 = vmatpush1.bf16.msra.mxu0 0
    %158 = vmatprep.subr.bf16.mxu0 0
    %159 = vmatpush1.bf16.msra.mxu0 0
    %160 = vmatprep.subr.bf16.mxu0 0
    %161 = vmatpush1.bf16.msra.mxu0 0
    %162 = vmatprep.subr.bf16.mxu0 0
    %163 = vmatpush1.bf16.msra.mxu0 0
    %164 = vmatprep.subr.bf16.mxu0 0
    %165 = vmatpush1.bf16.msra.mxu0 0
    %166 = vmatprep.subr.bf16.mxu0 0
    %167 = vmatpush1.bf16.msra.mxu0 0
    %168 = vmatprep.mubr.bf16.mxu0 0
    %169 = vmatmul.mubr.bf16.gmra.mrb[0].mxu0 %v84
    %v170 = vpop.f32.mrb[0].mxu0
    %v171 = vadd.f32 0.0, %v170
    %v172 = vpop.f32.mrb[0].mxu0
    %v173 = vpop.f32.mrb[0].mxu0
    %v174 = vadd.f32 0.0, %v173
    %v175 = vpop.f32.mrb[0].mxu0
    %176 = vmatprep.mubr.bf16.mxu0 0
    %177 = vmatmul.mubr.bf16.gmra.mrb[0].mxu0 %v85
    %v178 = vpop.f32.mrb[0].mxu0
    %v179 = vadd.f32 0.0, %v178
    %v180 = vpop.f32.mrb[0].mxu0
    %v181 = vpop.f32.mrb[0].mxu0
    %v182 = vadd.f32 0.0, %v181
    %v183 = vpop.f32.mrb[0].mxu0
    %184 = vdwg.mxu0
    %v185 = vadd.f32 %v56, %v171
    %v186 = vadd.f32 %v57, %v174
    %v187 = vadd.f32 %v58, %v179
    %v188 = vadd.f32 %v59, %v182
    %189 = vst [vmem:[#allocation2] sm:$0xff] %v185
    %190 = vst [vmem:[#allocation2 + $0x8] sm:$0xff] %v186
    %191 = vst [vmem:[#allocation2 + $0x10] sm:$0xff] %v187
    %192 = vst [vmem:[#allocation2 + $0x18] sm:$0xff] %v188
    // Predicated region
    $region26: #{tpu_custom_call.1} parent=1 // pred_check
      %p193 = pneg %p44
    $region27: #{tpu_custom_call.1} parent=1 // pred_check_branch
      %195 = sbr.rel (%p193) target = $region29
    $region28: #{tpu_custom_call.1} parent=1 // pred_region
      %v196 = vld [vmem:[#allocation2] sm:$0xff]
      %v197 = vld [vmem:[#allocation2 + $0x8] sm:$0xff]
      %v198 = vld [vmem:[#allocation2 + $0x10] sm:$0xff]
      %v199 = vld [vmem:[#allocation2 + $0x18] sm:$0xff]
      %v200 = vld [vmem:[%s2] sm:$0x1]
      %v202 = vlaneseq
      %v203 = vshrl.u32 %v202, 7
      %v204 = vsub.s32 0, %v203
      %v205 = vrot.slane %v200, %v204
      %v207 = vadd.f32 %v196, %v205
      %v208 = vadd.f32 %v197, %v205
      %v209 = vadd.f32 %v198, %v205
      %v210 = vadd.f32 %v199, %v205
      %v211 = vpack.c.bf16 %v208, %v207
      %v212 = vpack.c.bf16 %v210, %v209
      %v215 = vunpack.c.l.b16 %v211
      %v216 = vunpack.c.h.b16 %v211
      %v217 = vunpack.c.l.b16 %v212
      %v218 = vunpack.c.h.b16 %v212
      %v219 = vpack.c.b16 %v215, %v215
      %v220 = vpack.c.b16 %v216, %v216
      %v221 = vpack.c.b16 %v217, %v217
      %v222 = vpack.c.b16 %v218, %v218
      %227 = vst [vmem:[#allocation8] sm:$0xf] %v219
      %228 = vst [vmem:[#allocation8 + $0x4] sm:$0xf] %v220
      %229 = vst [vmem:[#allocation8 + $0x8] sm:$0xf] %v221
      %230 = vst [vmem:[#allocation8 + $0xc] sm:$0xf] %v222
    $region29: #{tpu_custom_call.1} parent=1 // pred_fallthru
      _
    // Predicated region
    $region30: #{tpu_custom_call.1} parent=1 // pred_check
      _
    $region31: #{tpu_custom_call.1} parent=1 // pred_check_branch
      %232 = sbr.rel (0) target = $region33
    $region32: #{tpu_custom_call.1} parent=1 // pred_region
      %s234 = ssub.s32 256, 256
      %235 = vsyncadd [#allocation5], %s234
      %s236 = sshll.u32 [#allocation8], 4
      %s237 = int_to_ptr.vmem [resolvable:$true] %s236
      %242 = dma.vmem_to_hbm [thread:$0]  %s237, 256, %s3, [#allocation5], 64, 64, 4
    $region33: #{tpu_custom_call.1} parent=1 // pred_fallthru
      _
    // Predicated region
    $region34: #{tpu_custom_call.1} parent=1 // pred_check
      _
    $region35: #{tpu_custom_call.1} parent=1 // pred_check_branch
      %244 = sbr.rel (0) target = $region37
    $region36: #{tpu_custom_call.1} parent=1 // pred_region
      %245 = dma.done [#allocation5], 256
    $region37: #{tpu_custom_call.1} parent=1 // pred_fallthru
      _
    %246 = vsyncpa [#allocation4], 1
    %247 = vsyncpa [#allocation7], 1
    %248 = vsyncpa [#allocation5], 1

</llo_original>
